<compile_context>
chip_gen: v6e
topology: v6e:2x2x1
jax: 0.10.0
libtpu: 0.0.40
codegen_flags: <defaults>
</compile_context>

<pallas_src>
import jax
import jax.numpy as jnp
from jax.experimental import pallas as pl
from jax.experimental.pallas import tpu as pltpu

_LANE = 128
# Native sublane packing (rows per vreg tile) by itemsize.
_SUBLANE_ALIGN = {4: 8, 2: 16, 1: 32}


def _minpool_kernel(x_ref, o_ref):
    # x_ref: (3, tile_rows, 128) VMEM   o_ref: (2, tile_rows, 128) VMEM
    o_ref[0, :, :] = x_ref[0, :, :]                               # first third, pass-through
    o_ref[1, :, :] = jnp.minimum(x_ref[2, :, :], x_ref[1, :, :])  # min(last, middle)


def _minpool_pallas(x, n, tile_rows=None):
    m = n // _LANE
    itemsize = jnp.dtype(x.dtype).itemsize
    align = _SUBLANE_ALIGN.get(itemsize, 8)

    if tile_rows is None:
        # ~2 MiB per third-tile: 2 bufs x (3 in + 2 out) tiles ~= 20 MiB VMEM.
        tile_rows = (2 * 1024 * 1024) // (_LANE * itemsize)

    # Keep >= ~8 grid steps when the input allows it: restores in/out DMA
    # overlap for near-threshold sizes and gives v7x's two TensorCores
    # something to shard (otherwise a big default tile collapses medium
    # inputs to a single-step grid handled by one core).
    min_steps = 8
    step_cap = pl.cdiv(m, min_steps)
    step_cap = pl.cdiv(step_cap, align) * align   # round up to sublane packing
    tile_rows = min(tile_rows, step_cap, m)
    # Dtype-aware sublane alignment (8 f32 / 16 bf16 / 32 int8-fp8).
    tile_rows = max(align, (tile_rows // align) * align)

    x3 = x.reshape(3, m, _LANE)  # contiguous view of the three thirds (free)
    grid = (pl.cdiv(m, tile_rows),)

    # 2 pipeline buffers x (3 input + 2 output) third-tiles, plus headroom.
    # ~24 MiB at the f32 default: above v5e's 16 MiB scoped default (which we
    # override here) and comfortably under v7x's 64 MiB physical VMEM.
    tile_third_bytes = tile_rows * _LANE * itemsize
    vmem_limit = int(2 * (3 + 2) * tile_third_bytes + (4 << 20))

    out = pl.pallas_call(
        _minpool_kernel,
        out_shape=jax.ShapeDtypeStruct((2, m, _LANE), x.dtype),
        grid=grid,
        in_specs=[pl.BlockSpec((3, tile_rows, _LANE), lambda i: (0, i, 0))],
        out_specs=pl.BlockSpec((2, tile_rows, _LANE), lambda i: (0, i, 0)),
        compiler_params=pltpu.CompilerParams(
            dimension_semantics=("parallel",),
            vmem_limit_bytes=vmem_limit),
        cost_estimate=pl.CostEstimate(
            flops=n, transcendentals=0, bytes_accessed=5 * n * itemsize),
    )(x3)
    return out.reshape(2 * n)


def minpool(x, *, min_elems_for_pallas=64 * 1024, tile_rows=None):
    k = x.shape[-1]
    if k % 3 != 0:
        raise ValueError("Shape not divisible by 3")
    if x.ndim != 1:
        # TODO(synk): the PyTorch module slices dim 0 while validating the
        # last dim; only the 1-D case (where those coincide) is implemented.
        raise ValueError("MinPool Pallas kernel implemented for 1-D inputs")
    n = k // 3
    # Short-circuit tiny / non-lane-aligned inputs: launch + pipeline overhead
    # dwarfs a sub-vreg workload, and ragged n would force masked stores.
    if n % _LANE != 0 or k < min_elems_for_pallas:
        return jnp.concatenate((x[:n], jnp.minimum(x[2 * n:], x[n:2 * n])))
    return _minpool_pallas(x, n, tile_rows=tile_rows)


def _reference(x):
    n = x.shape[-1] // 3
    return jnp.concatenate((x[:n], jnp.minimum(x[-n:], x[n:-n])))


if __name__ == "__main__":
    key = jax.random.PRNGKey(0)

    # Pallas path, f32: k = 3 * 32 * 128 = 12288 (n = 4096 -> m = 32 rows).
    # tile_rows=8 gives a 4-step streamed grid so the pipelined path is
    # exercised even at this small size.
    k = 3 * 32 * _LANE
    x = jax.random.normal(key, (k,), dtype=jnp.float32)
    y = jax.block_until_ready(minpool(x, min_elems_for_pallas=0, tile_rows=8))
    assert y.shape == (2 * (k // 3),), y.shape
    assert jnp.allclose(y, _reference(x)), "Pallas f32 path mismatch vs reference"

    # Pallas path, bf16: exercises dtype-aware sublane rounding (16-row packing)
    # and the >=8-step grid cap with the default (large) tile.
    k_bf = 3 * 64 * _LANE
    x_bf = jax.random.normal(jax.random.PRNGKey(2), (k_bf,), dtype=jnp.float32)
    x_bf = x_bf.astype(jnp.bfloat16)
    y_bf = jax.block_until_ready(minpool(x_bf, min_elems_for_pallas=0))
    assert jnp.array_equal(y_bf, _reference(x_bf)), "Pallas bf16 path mismatch"

    # Fallback path (tiny input, default threshold), matching original test size.
    x_small = jax.random.normal(jax.random.PRNGKey(1), (384,), dtype=jnp.float32)
    y_small = jax.block_until_ready(minpool(x_small))
    assert jnp.allclose(y_small, _reference(x_small)), "fallback path mismatch"

    print("KERNEL_OK")
</pallas_src>

<mosaic_0001>
module attributes {stable_mosaic.version = 11 : i64} {
  func.func @_minpool_kernel(%arg0: i32, %arg1: memref<3x8x128xf32, #tpu.memory_space<vmem>>, %arg2: memref<2x8x128xf32, #tpu.memory_space<vmem>>) attributes {dimension_semantics = [#tpu.dimension_semantics<parallel>], iteration_bounds = array<i64: 4>, scalar_prefetch = 0 : i64, scratch_operands = 0 : i64, tpu.core_type = #tpu.core_type<tc>, window_params = [{transform_indices = @transform_0, window_bounds = array<i64: 3, 8, 128>}, {transform_indices = @transform_1, window_bounds = array<i64: 2, 8, 128>}]} {
    %c0 = arith.constant 0 : index
    %c0_0 = arith.constant 0 : index
    %c0_1 = arith.constant 0 : index
    %0 = vector.load %arg1[%c0, %c0_0, %c0_1] : memref<3x8x128xf32, #tpu.memory_space<vmem>>, vector<1x8x128xf32>
    %1 = vector.shape_cast %0 : vector<1x8x128xf32> to vector<8x128xf32>
    %c0_2 = arith.constant 0 : index
    %c0_3 = arith.constant 0 : index
    %c0_4 = arith.constant 0 : index
    %2 = vector.load %arg2[%c0_2, %c0_3, %c0_4] : memref<2x8x128xf32, #tpu.memory_space<vmem>>, vector<1x8x128xf32>
    %3 = vector.shape_cast %2 : vector<1x8x128xf32> to vector<8x128xf32>
    %4 = vector.shape_cast %1 : vector<8x128xf32> to vector<1x8x128xf32>
    tpu.vector_store %arg2[%c0_2, %c0_3, %c0_4], %4 {strides = array<i32>} : memref<2x8x128xf32, #tpu.memory_space<vmem>>, vector<1x8x128xf32>,
    %c2 = arith.constant 2 : index
    %c0_5 = arith.constant 0 : index
    %c0_6 = arith.constant 0 : index
    %5 = vector.load %arg1[%c2, %c0_5, %c0_6] : memref<3x8x128xf32, #tpu.memory_space<vmem>>, vector<1x8x128xf32>
    %6 = vector.shape_cast %5 : vector<1x8x128xf32> to vector<8x128xf32>
    %c1 = arith.constant 1 : index
    %c0_7 = arith.constant 0 : index
    %c0_8 = arith.constant 0 : index
    %7 = vector.load %arg1[%c1, %c0_7, %c0_8] : memref<3x8x128xf32, #tpu.memory_space<vmem>>, vector<1x8x128xf32>
    %8 = vector.shape_cast %7 : vector<1x8x128xf32> to vector<8x128xf32>
    %9 = arith.minimumf %6, %8 : vector<8x128xf32>
    %c1_9 = arith.constant 1 : index
    %c0_10 = arith.constant 0 : index
    %c0_11 = arith.constant 0 : index
    %10 = vector.load %arg2[%c1_9, %c0_10, %c0_11] : memref<2x8x128xf32, #tpu.memory_space<vmem>>, vector<1x8x128xf32>
    %11 = vector.shape_cast %10 : vector<1x8x128xf32> to vector<8x128xf32>
    %12 = vector.shape_cast %9 : vector<8x128xf32> to vector<1x8x128xf32>
    tpu.vector_store %arg2[%c1_9, %c0_10, %c0_11], %12 {strides = array<i32>} : memref<2x8x128xf32, #tpu.memory_space<vmem>>, vector<1x8x128xf32>,
    return
  }
  func.func @transform_0(%arg0: i32) -> (i32, i32, i32) {
    %c0_i32 = arith.constant 0 : i32
    %c0_i32_0 = arith.constant 0 : i32
    %c0_i32_1 = arith.constant 0 : i32
    return %c0_i32, %arg0, %c0_i32_0 : i32, i32, i32
  }
  func.func @transform_1(%arg0: i32) -> (i32, i32, i32) {
    %c0_i32 = arith.constant 0 : i32
    %c0_i32_0 = arith.constant 0 : i32
    %c0_i32_1 = arith.constant 0 : i32
    return %c0_i32, %arg0, %c0_i32_0 : i32, i32, i32
  }
}

</mosaic_0001>

<llo_original>
// kernel: tpu_custom_call.1
$region0: #{tpu_custom_call.1}
  #allocation0 [shape = 'u32[]', space=smem, size = 0x4, offset = 0x4, fixed_abs, tag = 'smem constant byte address 0x4 - core index']
  #allocation1 [shape = 'u32[144,128]{1,0:T(1,128)}', space=vmem, size = 0x12000, scoped, tag = 'internal scratch']
  %s0 = inlined_call_operand.hbm [shape: f32[3,32,128], index: 0, kind: input, shape index: {}]
  %s1 = inlined_call_operand.hbm [shape: f32[2,32,128], index: 1, kind: output, shape index: {}]
  %s2 = sld [smem:[#allocation0]]
  $region41: #{tpu_custom_call.1} parent=0
    _
  %s4 = ssub.s32 1, %s2
  %s5 = scalar_select 0, %s4, %s2
  $region1: #{tpu_custom_call.1} parent=0
    #allocation2 [shape = 'u8[24576]{0}', space=vmem, size = 0x6000, scoped, tag = 'input window, operand 0']
    #allocation3 [shape = 's32[2]{0}', space=sflag, size = 0x8, scoped, tag = 'scoped memory for tpu_custom_call.1']
    #allocation4 [shape = 's32[2]{0}', space=sflag, size = 0x8, scoped, tag = 'scoped memory for tpu_custom_call.1']
    #allocation5 [shape = 'u8[16384]{0}', space=vmem, size = 0x4000, scoped, tag = 'output window, operand 0']
    %6 = vsyncpa [#allocation3], 0
    %s7 = scalar_lea.sflag [#allocation3], 1
    %8 = vsyncpa %s7, 0
    %9 = vsyncpa [#allocation4], 0
    %s10 = scalar_lea.sflag [#allocation4], 1
    %11 = vsyncpa %s10, 0
    loop: start=0, step=1, limit=6
    $region2: #{tpu_custom_call.1} parent=1 // loop_pre_header
      _
    $region3: #{tpu_custom_call.1} parent=1 // loop_header
      %s13 = sphi 0, %s17
      %p14 = scmp.ge.s32.totalorder %s13, 6
      %s23 = sphi 0, %s25
      %s26 = sphi 0, %s23
      %s27 = sphi 0, %s26
      %s43 = sphi 0, %s27
      %s49 = sphi 0, %s51
      %s52 = sphi 0, %s49
      %s53 = sphi 0, %s52
      %s69 = sphi 0, %s53
    $region4: #{tpu_custom_call.1} parent=1 // loop_header_branch
      %16 = sbr.rel (%p14) target = $region8
    $region5: #{tpu_custom_call.1} parent=1 // loop_body
      %s18 = ssub.s32 %s13, 1
      %s19 = ssub.s32 %s13, 2
      %s20 = sadd.s32 %s13, 1
      %s21 = ssub.s32 %s13, %s20
      %p22 = scmp.eq.s32.totalorder %s21, 0
      %s24 = sadd.s32 %s23, 1
      %s25 = scalar_select %p22, %s23, %s24
      %p28 = pneg %p22
      %p29 = scmp.eq.s32.totalorder %s13, 3
      %p30 = por %p28, %p29
      %p31 = scmp.ne.s32.totalorder %s23, %s26
      %p32 = scmp.eq.s32.totalorder %s13, 0
      %p33 = por %p31, %p32
      %p34 = scmp.ne.s32.totalorder %s23, %s26
      %p35 = scmp.eq.s32.totalorder %s18, 3
      %p36 = por %p34, %p35
      %p37 = scmp.ne.s32.totalorder %s26, %s27
      %p38 = scmp.eq.s32.totalorder %s18, 0
      %p39 = por %p37, %p38
      %p40 = scmp.ne.s32.totalorder %s26, %s27
      %p41 = scmp.eq.s32.totalorder %s19, 3
      %p42 = por %p40, %p41
      %p44 = scmp.ne.s32.totalorder %s27, %s43
      %p45 = scmp.eq.s32.totalorder %s19, 0
      %p46 = por %p44, %p45
      %s47 = ssub.s32 %s13, %s20
      %p48 = scmp.eq.s32.totalorder %s47, 0
      %s50 = sadd.s32 %s49, 1
      %s51 = scalar_select %p48, %s49, %s50
      %p54 = pneg %p48
      %p55 = scmp.eq.s32.totalorder %s13, 3
      %p56 = por %p54, %p55
      %p57 = scmp.ne.s32.totalorder %s49, %s52
      %p58 = scmp.eq.s32.totalorder %s13, 0
      %p59 = por %p57, %p58
      %p60 = scmp.ne.s32.totalorder %s49, %s52
      %p61 = scmp.eq.s32.totalorder %s18, 3
      %p62 = por %p60, %p61
      %p63 = scmp.ne.s32.totalorder %s52, %s53
      %p64 = scmp.eq.s32.totalorder %s18, 0
      %p65 = por %p63, %p64
      %p66 = scmp.ne.s32.totalorder %s52, %s53
      %p67 = scmp.eq.s32.totalorder %s19, 3
      %p68 = por %p66, %p67
      %p70 = scmp.ne.s32.totalorder %s53, %s69
      %p71 = scmp.eq.s32.totalorder %s19, 0
      %p72 = por %p70, %p71
      %p73 = scmp.le.s32.totalorder 1, %s13
      %p74 = scmp.lt.s32.totalorder %s13, 5
      %p75 = pnand %p73, %p74
      %p76 = pneg %p75
      // Predicated region
      $region9: #{tpu_custom_call.1} parent=5 // pred_check
        _
      $region10: #{tpu_custom_call.1} parent=5 // pred_check_branch
        %78 = sbr.rel (%p75) target = $region12
      $region11: #{tpu_custom_call.1} parent=5 // pred_region
        %s79 = ssub.s32 %s13, 1
      $region12: #{tpu_custom_call.1} parent=5 // pred_fallthru
        _
      %p80 = scmp.lt.s32.totalorder %s13, 4
      // Predicated region
      $region13: #{tpu_custom_call.1} parent=5 // pred_check
        %p81 = pneg %p80
      $region14: #{tpu_custom_call.1} parent=5 // pred_check_branch
        %83 = sbr.rel (%p81) target = $region16
      $region15: #{tpu_custom_call.1} parent=5 // pred_region
        // Predicated region
        $region17: #{tpu_custom_call.1} parent=15 // pred_check
          %p84 = pneg %p33
        $region18: #{tpu_custom_call.1} parent=15 // pred_check_branch
          %86 = sbr.rel (%p84) target = $region20
        $region19: #{tpu_custom_call.1} parent=15 // pred_region
          %s87 = sand.u32 %s23, 1
          %s88 = scalar_lea.sflag [#allocation3], %s87
          %s89 = sand.u32 %s23, 1
          %s90 = smul.addr %s89, 24
          %s91 = scalar_lea.vmem [#allocation2], %s90
          %s93 = ssub.s32 384, 384
          %94 = vsyncadd %s88, %s93
          %s95 = smul.addr %s13, 128
          %s96 = scalar_lea.hbm %s0, %s95
          %s97 = sshll.u32 %s91, 4
          %s98 = int_to_ptr.vmem [resolvable:$true] %s97
          %103 = dma.hbm_to_vmem [thread:$0]  %s96, 384, %s98, %s88, 512, 128, 8
        $region20: #{tpu_custom_call.1} parent=15 // pred_fallthru
          _
      $region16: #{tpu_custom_call.1} parent=5 // pred_fallthru
        _
      %p104 = scmp.le.s32.totalorder 1, %s13
      %p105 = scmp.lt.s32.totalorder %s13, 5
      %p106 = pnand %p104, %p105
      %p107 = pneg %p106
      // Predicated region
      $region21: #{tpu_custom_call.1} parent=5 // pred_check
        _
      $region22: #{tpu_custom_call.1} parent=5 // pred_check_branch
        %109 = sbr.rel (%p106) target = $region24
      $region23: #{tpu_custom_call.1} parent=5 // pred_region
        %s110 = ssub.s32 %s13, 1
        %s111 = sand.u32 %s26, 1
        %s112 = scalar_lea.sflag [#allocation3], %s111
        %s113 = sand.u32 %s26, 1
        %s114 = smul.addr %s113, 24
        %s115 = scalar_lea.vmem [#allocation2], %s114
        // Predicated region
        $region25: #{tpu_custom_call.1} parent=23 // pred_check
          %p116 = pneg %p39
        $region26: #{tpu_custom_call.1} parent=23 // pred_check_branch
          %118 = sbr.rel (%p116) target = $region28
        $region27: #{tpu_custom_call.1} parent=23 // pred_region
          %119 = dma.done %s112, 384
        $region28: #{tpu_custom_call.1} parent=23 // pred_fallthru
          _
        %s120 = sand.u32 %s26, 1
        %s121 = scalar_lea.sflag [#allocation3], %s120
        %s122 = sand.u32 %s26, 1
        %s123 = smul.addr %s122, 24
        %s124 = scalar_lea.vmem [#allocation2], %s123
        %p125 = pneg %p39
        %p126 = pneg %p36
        %p127 = pneg %p65
        %p128 = pneg %p62
        %s129 = sand.u32 %s52, 1
        %s130 = scalar_lea.sflag [#allocation4], %s129
        %s131 = sand.u32 %s52, 1
        %s132 = smul.addr %s131, 16
        %s133 = scalar_lea.vmem [#allocation5], %s132
        %v134 = vld [vmem:[%s115] sm:$0xff]
        %135 = vst [vmem:[%s133] sm:$0xff] %v134
        %s136 = scalar_lea.vmem %s115, 16 [#allocation2]
        %v137 = vld [vmem:[%s136] sm:$0xff]
        %s138 = scalar_lea.vmem %s115, 8 [#allocation2]
        %v139 = vld [vmem:[%s138] sm:$0xff]
        %v140 = vmin.f32 %v137, %v139
        %s141 = scalar_lea.vmem %s133, 8 [#allocation5]
        %142 = vst [vmem:[%s141] sm:$0xff] %v140
        %s143 = sand.u32 %s52, 1
        %s144 = scalar_lea.sflag [#allocation4], %s143
        %s145 = sand.u32 %s52, 1
        %s146 = smul.addr %s145, 16
        %s147 = scalar_lea.vmem [#allocation5], %s146
        // Predicated region
        $region29: #{tpu_custom_call.1} parent=23 // pred_check
          %p148 = pneg %p62
        $region30: #{tpu_custom_call.1} parent=23 // pred_check_branch
          %150 = sbr.rel (%p148) target = $region32
        $region31: #{tpu_custom_call.1} parent=23 // pred_region
          %s152 = ssub.s32 256, 256
          %153 = vsyncadd %s144, %s152
          %s154 = smul.addr %s18, 128
          %s155 = scalar_lea.hbm %s1, %s154
          %s156 = sshll.u32 %s147, 4
          %s157 = int_to_ptr.vmem [resolvable:$true] %s156
          %162 = dma.vmem_to_hbm [thread:$0]  %s157, 256, %s155, %s144, 128, 512, 8
        $region32: #{tpu_custom_call.1} parent=23 // pred_fallthru
          _
      $region24: #{tpu_custom_call.1} parent=5 // pred_fallthru
        _
      %p163 = scmp.le.s32.totalorder 2, %s13
      // Predicated region
      $region33: #{tpu_custom_call.1} parent=5 // pred_check
        %p164 = pneg %p163
      $region34: #{tpu_custom_call.1} parent=5 // pred_check_branch
        %166 = sbr.rel (%p164) target = $region36
      $region35: #{tpu_custom_call.1} parent=5 // pred_region
        %s167 = ssub.s32 %s13, 2
        // Predicated region
        $region37: #{tpu_custom_call.1} parent=35 // pred_check
          %p168 = pneg %p68
        $region38: #{tpu_custom_call.1} parent=35 // pred_check_branch
          %170 = sbr.rel (%p168) target = $region40
        $region39: #{tpu_custom_call.1} parent=35 // pred_region
          %s171 = sand.u32 %s53, 1
          %s172 = scalar_lea.sflag [#allocation4], %s171
          %s173 = sand.u32 %s53, 1
          %s174 = smul.addr %s173, 16
          %s175 = scalar_lea.vmem [#allocation5], %s174
          %176 = dma.done %s172, 256
        $region40: #{tpu_custom_call.1} parent=35 // pred_fallthru
          _
      $region36: #{tpu_custom_call.1} parent=5 // pred_fallthru
        _
    $region6: #{tpu_custom_call.1} parent=1 // loop_footer
      %s17 = sadd.s32 1, %s13
    $region7: #{tpu_custom_call.1} parent=1 // loop_footer_branch
      %12 = sbr.rel target = $region3
    $region8: #{tpu_custom_call.1} parent=1 // loop_exit
      _
    %177 = vsyncpa [#allocation3], 1
    %s178 = scalar_lea.sflag [#allocation3], 1
    %179 = vsyncpa %s178, 1
    %180 = vsyncpa [#allocation4], 1
    %s181 = scalar_lea.sflag [#allocation4], 1
    %182 = vsyncpa %s181, 1

</llo_original>
